<compile_context>
chip_gen: v7x
topology: tpu7x:2x2x1
jax: 0.10.0
libtpu: 0.0.40
codegen_flags: <defaults>
</compile_context>

<pallas_src>
import jax
import jax.numpy as jnp
from jax.experimental import pallas as pl
from jax.experimental.pallas import tpu as pltpu

INPUT_DIM = 150
HIDDEN_DIM = 150
NUM_HIDDEN_LAYERS = 5          # Linear+ReLU blocks inside self.model
NUM_LAYERS = NUM_HIDDEN_LAYERS + 1
PAD_DIM = 256                  # lane-dense padded feature width


def _round_up(x, m):
    return (x + m - 1) // m * m


def _cdiv(a, b):
    return -(-a // b)


def _ann_kernel(x_ref, w_ref, b_ref, out_ref):
    """x_ref: (TB, 150) f32; w_ref: (6, 256, 256) bf16; b_ref: (6, 1, 256) f32;
    out_ref: (TB, 150) f32."""
    tb = x_ref.shape[0]

    # Pad features 150 -> 256 in VMEM (zero lanes are inert through the whole
    # chain because the padded weight rows/cols and bias lanes are zero), then
    # stream bf16 activations into the MXU with f32 accumulation.
    x = jnp.concatenate(
        [x_ref[...], jnp.zeros((tb, PAD_DIM - INPUT_DIM), jnp.float32)],
        axis=-1)
    h = x.astype(jnp.bfloat16)                         # (TB, 256) bf16

    # 5 hidden layers: Linear -> ReLU.
    # TODO(synk): training-mode Dropout(0.2) not implemented; eval-mode
    # (identity) semantics are used, matching model.eval().
    for layer in range(NUM_HIDDEN_LAYERS):
        acc = jnp.dot(h, w_ref[layer],
                      preferred_element_type=jnp.float32) + b_ref[layer]
        h = jnp.maximum(acc, 0.0).astype(jnp.bfloat16)

    # Output layer: Linear, no activation. Only the first 150 lanes are real;
    # write them straight to the (TB, 150) output block (no extra slice pass).
    y = jnp.dot(h, w_ref[NUM_HIDDEN_LAYERS],
                preferred_element_type=jnp.float32) + b_ref[NUM_HIDDEN_LAYERS]
    out_ref[...] = y[:, :INPUT_DIM].astype(out_ref.dtype)


@jax.jit
def ann_forward(x, w_slab, b_slab):
    """x: (B, 150) f32; w_slab: (6, 256, 256) bf16; b_slab: (6, 1, 256) f32."""
    B, D = x.shape
    assert D == INPUT_DIM

    # ---- batch tiling ----------------------------------------------------
    # Round to 16 rows (dense packed-bf16 sublanes). Large batches use big
    # tiles (amortize per-step overhead); mid/large batches keep >=2 blocks so
    # the "parallel" axis can use both v7x TensorCores.
    B_r = _round_up(B, 16)
    if B_r >= 4096:
        TB = min(2048, _round_up(_cdiv(B_r, 4), 256))
    elif B_r >= 512:
        TB = _round_up(_cdiv(B_r, 2), 16)
    else:
        TB = B_r
    B_pad = _round_up(B_r, TB)
    num_blocks = B_pad // TB

    # Only a row-pad (rare; zero cost when B is already a tile multiple).
    if B_pad != B:
        x = jnp.pad(x, ((0, B_pad - B), (0, 0)))

    cost = pl.CostEstimate(
        flops=2 * B_pad * NUM_LAYERS * PAD_DIM * PAD_DIM,
        transcendentals=0,
        bytes_accessed=(w_slab.size * 2 + b_slab.size * 4
                        + 2 * B_pad * INPUT_DIM * 4),
    )

    out = pl.pallas_call(
        _ann_kernel,
        out_shape=jax.ShapeDtypeStruct((B_pad, INPUT_DIM), jnp.float32),
        grid=(num_blocks,),
        in_specs=[
            pl.BlockSpec((TB, INPUT_DIM), lambda i: (i, 0)),          # x tile
            pl.BlockSpec((NUM_LAYERS, PAD_DIM, PAD_DIM),
                         lambda i: (0, 0, 0)),                        # weights (pinned)
            pl.BlockSpec((NUM_LAYERS, 1, PAD_DIM),
                         lambda i: (0, 0, 0)),                        # biases (pinned)
        ],
        out_specs=pl.BlockSpec((TB, INPUT_DIM), lambda i: (i, 0)),
        compiler_params=pltpu.CompilerParams(
            dimension_semantics=("parallel",),
            vmem_limit_bytes=32 << 20,
        ),
        cost_estimate=cost,
    )(x, w_slab, b_slab)

    if B_pad != B:
        out = out[:B]
    return out


def init_params(key):
    """PyTorch nn.Linear-style init (uniform +-1/sqrt(fan_in)).

    Weights stored as (in_features, out_features); biases as (1, out_features).
    """
    dims = [(INPUT_DIM, HIDDEN_DIM)] + \
           [(HIDDEN_DIM, HIDDEN_DIM)] * (NUM_HIDDEN_LAYERS - 1) + \
           [(HIDDEN_DIM, INPUT_DIM)]
    params = []
    for (fan_in, fan_out) in dims:
        key, kw, kb = jax.random.split(key, 3)
        bound = 1.0 / jnp.sqrt(jnp.float32(fan_in))
        w = jax.random.uniform(kw, (fan_in, fan_out), jnp.float32, -bound, bound)
        b = jax.random.uniform(kb, (1, fan_out), jnp.float32, -bound, bound)
        params.extend([w, b])
    return params


def prepare_params(params):
    """Zero-pad each (150,150)/(1,150) param to 256-wide and fuse into slabs.

    Zero padding is mathematically inert through the Linear+ReLU chain.
    Returns (w_slab (6,256,256) bf16, b_slab (6,1,256) f32).
    """
    ws, bs = [], []
    for layer in range(NUM_LAYERS):
        w = params[2 * layer]
        b = params[2 * layer + 1]
        w_p = jnp.zeros((PAD_DIM, PAD_DIM), jnp.float32)
        w_p = w_p.at[:w.shape[0], :w.shape[1]].set(w)
        b_p = jnp.zeros((1, PAD_DIM), jnp.float32)
        b_p = b_p.at[:, :b.shape[1]].set(b)
        ws.append(w_p.astype(jnp.bfloat16))
        bs.append(b_p)
    return jnp.stack(ws), jnp.stack(bs)


def ann_reference(x, params):
    """Pure-JAX reference mirroring the kernel numerics (bf16 in, f32 acc)."""
    h = x
    for layer in range(NUM_LAYERS):
        w = params[2 * layer].astype(jnp.bfloat16)
        b = params[2 * layer + 1]
        h = jnp.dot(h.astype(jnp.bfloat16), w,
                    preferred_element_type=jnp.float32) + b
        if layer < NUM_HIDDEN_LAYERS:
            h = jnp.maximum(h, 0.0)
    return h


if __name__ == "__main__":
    key = jax.random.PRNGKey(0)
    key, kx, kx2 = jax.random.split(key, 3)

    params = init_params(key)
    w_slab, b_slab = prepare_params(params)

    # Small batch (single tile, padded 8 -> 16 rows).
    B = 8
    x = jax.random.normal(kx, (B, INPUT_DIM), jnp.float32)
    out = jax.block_until_ready(ann_forward(x, w_slab, b_slab))
    ref = ann_reference(x, params)
    assert out.shape == (B, INPUT_DIM)
    assert jnp.allclose(out, ref, atol=2e-2, rtol=2e-2), "mismatch (small batch)"

    # Mid batch (exercises the multi-block / row-padded path).
    B2 = 520
    x2 = jax.random.normal(kx2, (B2, INPUT_DIM), jnp.float32)
    out2 = jax.block_until_ready(ann_forward(x2, w_slab, b_slab))
    ref2 = ann_reference(x2, params)
    assert out2.shape == (B2, INPUT_DIM)
    assert jnp.allclose(out2, ref2, atol=2e-2, rtol=2e-2), "mismatch (mid batch)"

    print("KERNEL_OK")
</pallas_src>

<mosaic_0001>
module attributes {stable_mosaic.version = 11 : i64} {
  func.func @_ann_kernel(%arg0: i32, %arg1: memref<16x150xf32, #tpu.memory_space<vmem>>, %arg2: memref<6x256x256xbf16, #tpu.memory_space<vmem>>, %arg3: memref<6x1x256xf32, #tpu.memory_space<vmem>>, %arg4: memref<16x150xf32, #tpu.memory_space<vmem>>) attributes {dimension_semantics = [#tpu.dimension_semantics<parallel>], iteration_bounds = array<i64: 1>, scalar_prefetch = 0 : i64, scratch_operands = 0 : i64, tpu.core_type = #tpu.core_type<tc>, window_params = [{transform_indices = @transform_0, window_bounds = array<i64: 16, 150>}, {pipeline_mode = #tpu.pipeline_mode<synchronous>, transform_indices = @transform_1, window_bounds = array<i64: 6, 256, 256>}, {pipeline_mode = #tpu.pipeline_mode<synchronous>, transform_indices = @transform_2, window_bounds = array<i64: 6, 1, 256>}, {transform_indices = @transform_3, window_bounds = array<i64: 16, 150>}]} {
    %c0 = arith.constant 0 : index
    %c0_0 = arith.constant 0 : index
    %0 = vector.load %arg1[%c0, %c0_0] : memref<16x150xf32, #tpu.memory_space<vmem>>, vector<16x150xf32>
    %cst = arith.constant 0.000000e+00 : f32
    %1 = vector.broadcast %cst : f32 to vector<16x106xf32>
    %2 = tpu.concatenate %0, %1 in 1 : vector<16x150xf32>, vector<16x106xf32> -> vector<16x256xf32>
    %3 = arith.truncf %2 : vector<16x256xf32> to vector<16x256xbf16>
    %c0_1 = arith.constant 0 : index
    %c0_2 = arith.constant 0 : index
    %c0_3 = arith.constant 0 : index
    %4 = vector.load %arg2[%c0_1, %c0_2, %c0_3] : memref<6x256x256xbf16, #tpu.memory_space<vmem>>, vector<1x256x256xbf16>
    %5 = vector.shape_cast %4 : vector<1x256x256xbf16> to vector<256x256xbf16>
    %cst_4 = arith.constant dense<0.000000e+00> : vector<16x256xf32>
    %6 = tpu.matmul %3, %5, %cst_4 {dimension_numbers = #tpu.dot_dimension_numbers<[1], [0], [0], [1], [0, 0, 1, 1], [], []>} : vector<16x256xbf16>, vector<256x256xbf16>, vector<16x256xf32> -> vector<16x256xf32>
    %c0_5 = arith.constant 0 : index
    %c0_6 = arith.constant 0 : index
    %c0_7 = arith.constant 0 : index
    %7 = vector.load %arg3[%c0_5, %c0_6, %c0_7] : memref<6x1x256xf32, #tpu.memory_space<vmem>>, vector<1x1x256xf32>
    %8 = vector.shape_cast %7 : vector<1x1x256xf32> to vector<1x256xf32>
    %9 = vector.broadcast %8 : vector<1x256xf32> to vector<16x256xf32>
    %10 = arith.addf %6, %9 : vector<16x256xf32>
    %cst_8 = arith.constant 0.000000e+00 : f32
    %11 = vector.broadcast %cst_8 : f32 to vector<16x256xf32>
    %12 = arith.maximumf %10, %11 : vector<16x256xf32>
    %13 = arith.truncf %12 : vector<16x256xf32> to vector<16x256xbf16>
    %c1 = arith.constant 1 : index
    %c0_9 = arith.constant 0 : index
    %c0_10 = arith.constant 0 : index
    %14 = vector.load %arg2[%c1, %c0_9, %c0_10] : memref<6x256x256xbf16, #tpu.memory_space<vmem>>, vector<1x256x256xbf16>
    %15 = vector.shape_cast %14 : vector<1x256x256xbf16> to vector<256x256xbf16>
    %cst_11 = arith.constant dense<0.000000e+00> : vector<16x256xf32>
    %16 = tpu.matmul %13, %15, %cst_11 {dimension_numbers = #tpu.dot_dimension_numbers<[1], [0], [0], [1], [0, 0, 1, 1], [], []>} : vector<16x256xbf16>, vector<256x256xbf16>, vector<16x256xf32> -> vector<16x256xf32>
    %c1_12 = arith.constant 1 : index
    %c0_13 = arith.constant 0 : index
    %c0_14 = arith.constant 0 : index
    %17 = vector.load %arg3[%c1_12, %c0_13, %c0_14] : memref<6x1x256xf32, #tpu.memory_space<vmem>>, vector<1x1x256xf32>
    %18 = vector.shape_cast %17 : vector<1x1x256xf32> to vector<1x256xf32>
    %19 = vector.broadcast %18 : vector<1x256xf32> to vector<16x256xf32>
    %20 = arith.addf %16, %19 : vector<16x256xf32>
    %cst_15 = arith.constant 0.000000e+00 : f32
    %21 = vector.broadcast %cst_15 : f32 to vector<16x256xf32>
    %22 = arith.maximumf %20, %21 : vector<16x256xf32>
    %23 = arith.truncf %22 : vector<16x256xf32> to vector<16x256xbf16>
    %c2 = arith.constant 2 : index
    %c0_16 = arith.constant 0 : index
    %c0_17 = arith.constant 0 : index
    %24 = vector.load %arg2[%c2, %c0_16, %c0_17] : memref<6x256x256xbf16, #tpu.memory_space<vmem>>, vector<1x256x256xbf16>
    %25 = vector.shape_cast %24 : vector<1x256x256xbf16> to vector<256x256xbf16>
    %cst_18 = arith.constant dense<0.000000e+00> : vector<16x256xf32>
    %26 = tpu.matmul %23, %25, %cst_18 {dimension_numbers = #tpu.dot_dimension_numbers<[1], [0], [0], [1], [0, 0, 1, 1], [], []>} : vector<16x256xbf16>, vector<256x256xbf16>, vector<16x256xf32> -> vector<16x256xf32>
    %c2_19 = arith.constant 2 : index
    %c0_20 = arith.constant 0 : index
    %c0_21 = arith.constant 0 : index
    %27 = vector.load %arg3[%c2_19, %c0_20, %c0_21] : memref<6x1x256xf32, #tpu.memory_space<vmem>>, vector<1x1x256xf32>
    %28 = vector.shape_cast %27 : vector<1x1x256xf32> to vector<1x256xf32>
    %29 = vector.broadcast %28 : vector<1x256xf32> to vector<16x256xf32>
    %30 = arith.addf %26, %29 : vector<16x256xf32>
    %cst_22 = arith.constant 0.000000e+00 : f32
    %31 = vector.broadcast %cst_22 : f32 to vector<16x256xf32>
    %32 = arith.maximumf %30, %31 : vector<16x256xf32>
    %33 = arith.truncf %32 : vector<16x256xf32> to vector<16x256xbf16>
    %c3 = arith.constant 3 : index
    %c0_23 = arith.constant 0 : index
    %c0_24 = arith.constant 0 : index
    %34 = vector.load %arg2[%c3, %c0_23, %c0_24] : memref<6x256x256xbf16, #tpu.memory_space<vmem>>, vector<1x256x256xbf16>
    %35 = vector.shape_cast %34 : vector<1x256x256xbf16> to vector<256x256xbf16>
    %cst_25 = arith.constant dense<0.000000e+00> : vector<16x256xf32>
    %36 = tpu.matmul %33, %35, %cst_25 {dimension_numbers = #tpu.dot_dimension_numbers<[1], [0], [0], [1], [0, 0, 1, 1], [], []>} : vector<16x256xbf16>, vector<256x256xbf16>, vector<16x256xf32> -> vector<16x256xf32>
    %c3_26 = arith.constant 3 : index
    %c0_27 = arith.constant 0 : index
    %c0_28 = arith.constant 0 : index
    %37 = vector.load %arg3[%c3_26, %c0_27, %c0_28] : memref<6x1x256xf32, #tpu.memory_space<vmem>>, vector<1x1x256xf32>
    %38 = vector.shape_cast %37 : vector<1x1x256xf32> to vector<1x256xf32>
    %39 = vector.broadcast %38 : vector<1x256xf32> to vector<16x256xf32>
    %40 = arith.addf %36, %39 : vector<16x256xf32>
    %cst_29 = arith.constant 0.000000e+00 : f32
    %41 = vector.broadcast %cst_29 : f32 to vector<16x256xf32>
    %42 = arith.maximumf %40, %41 : vector<16x256xf32>
    %43 = arith.truncf %42 : vector<16x256xf32> to vector<16x256xbf16>
    %c4 = arith.constant 4 : index
    %c0_30 = arith.constant 0 : index
    %c0_31 = arith.constant 0 : index
    %44 = vector.load %arg2[%c4, %c0_30, %c0_31] : memref<6x256x256xbf16, #tpu.memory_space<vmem>>, vector<1x256x256xbf16>
    %45 = vector.shape_cast %44 : vector<1x256x256xbf16> to vector<256x256xbf16>
    %cst_32 = arith.constant dense<0.000000e+00> : vector<16x256xf32>
    %46 = tpu.matmul %43, %45, %cst_32 {dimension_numbers = #tpu.dot_dimension_numbers<[1], [0], [0], [1], [0, 0, 1, 1], [], []>} : vector<16x256xbf16>, vector<256x256xbf16>, vector<16x256xf32> -> vector<16x256xf32>
    %c4_33 = arith.constant 4 : index
    %c0_34 = arith.constant 0 : index
    %c0_35 = arith.constant 0 : index
    %47 = vector.load %arg3[%c4_33, %c0_34, %c0_35] : memref<6x1x256xf32, #tpu.memory_space<vmem>>, vector<1x1x256xf32>
    %48 = vector.shape_cast %47 : vector<1x1x256xf32> to vector<1x256xf32>
    %49 = vector.broadcast %48 : vector<1x256xf32> to vector<16x256xf32>
    %50 = arith.addf %46, %49 : vector<16x256xf32>
    %cst_36 = arith.constant 0.000000e+00 : f32
    %51 = vector.broadcast %cst_36 : f32 to vector<16x256xf32>
    %52 = arith.maximumf %50, %51 : vector<16x256xf32>
    %53 = arith.truncf %52 : vector<16x256xf32> to vector<16x256xbf16>
    %c5 = arith.constant 5 : index
    %c0_37 = arith.constant 0 : index
    %c0_38 = arith.constant 0 : index
    %54 = vector.load %arg2[%c5, %c0_37, %c0_38] : memref<6x256x256xbf16, #tpu.memory_space<vmem>>, vector<1x256x256xbf16>
    %55 = vector.shape_cast %54 : vector<1x256x256xbf16> to vector<256x256xbf16>
    %cst_39 = arith.constant dense<0.000000e+00> : vector<16x256xf32>
    %56 = tpu.matmul %53, %55, %cst_39 {dimension_numbers = #tpu.dot_dimension_numbers<[1], [0], [0], [1], [0, 0, 1, 1], [], []>} : vector<16x256xbf16>, vector<256x256xbf16>, vector<16x256xf32> -> vector<16x256xf32>
    %c5_40 = arith.constant 5 : index
    %c0_41 = arith.constant 0 : index
    %c0_42 = arith.constant 0 : index
    %57 = vector.load %arg3[%c5_40, %c0_41, %c0_42] : memref<6x1x256xf32, #tpu.memory_space<vmem>>, vector<1x1x256xf32>
    %58 = vector.shape_cast %57 : vector<1x1x256xf32> to vector<1x256xf32>
    %59 = vector.broadcast %58 : vector<1x256xf32> to vector<16x256xf32>
    %60 = arith.addf %56, %59 : vector<16x256xf32>
    %61 = vector.extract_strided_slice %60 {offsets = [0, 0], sizes = [16, 150], strides = [1, 1]} : vector<16x256xf32> to vector<16x150xf32>
    %c0_43 = arith.constant 0 : index
    %c0_44 = arith.constant 0 : index
    %62 = vector.load %arg4[%c0_43, %c0_44] : memref<16x150xf32, #tpu.memory_space<vmem>>, vector<16x150xf32>
    tpu.vector_store %arg4[%c0_43, %c0_44], %61 {strides = array<i32>} : memref<16x150xf32, #tpu.memory_space<vmem>>, vector<16x150xf32>,
    return
  }
  func.func @transform_0(%arg0: i32) -> (i32, i32) {
    %c0_i32 = arith.constant 0 : i32
    %c0_i32_0 = arith.constant 0 : i32
    return %arg0, %c0_i32 : i32, i32
  }
  func.func @transform_1(%arg0: i32) -> (i32, i32, i32) {
    %c0_i32 = arith.constant 0 : i32
    %c0_i32_0 = arith.constant 0 : i32
    %c0_i32_1 = arith.constant 0 : i32
    %c0_i32_2 = arith.constant 0 : i32
    return %c0_i32, %c0_i32_0, %c0_i32_1 : i32, i32, i32
  }
  func.func @transform_2(%arg0: i32) -> (i32, i32, i32) {
    %c0_i32 = arith.constant 0 : i32
    %c0_i32_0 = arith.constant 0 : i32
    %c0_i32_1 = arith.constant 0 : i32
    %c0_i32_2 = arith.constant 0 : i32
    return %c0_i32, %c0_i32_0, %c0_i32_1 : i32, i32, i32
  }
  func.func @transform_3(%arg0: i32) -> (i32, i32) {
    %c0_i32 = arith.constant 0 : i32
    %c0_i32_0 = arith.constant 0 : i32
    return %arg0, %c0_i32 : i32, i32
  }
}

</mosaic_0001>

<llo_original>
// kernel: ann_forward.1
$region0: #{ann_forward.1}
  #allocation0 [shape = 'u32[]', space=smem, size = 0x4, offset = 0x4, fixed_abs, tag = 'smem constant byte address 0x4 - core index']
  #allocation1 [shape = 'u32[144,128]{1,0:T(1,128)}', space=vmem, size = 0x12000, scoped, tag = 'internal scratch']
  %s0 = inlined_call_operand.vmem [shape: f32[16,150], index: 0, kind: input, shape index: {}]
  %s1 = inlined_call_operand.hbm [shape: bf16[6,256,256], index: 1, kind: input, shape index: {}]
  %s2 = inlined_call_operand.vmem [shape: f32[6,1,256], index: 2, kind: input, shape index: {}]
  %s3 = inlined_call_operand.vmem [shape: f32[16,150], index: 3, kind: output, shape index: {}]
  %s4 = sld [smem:[#allocation0]]
  $region26: #{ann_forward.1} parent=0
    _
  %s6 = ssub.s32 1, %s4
  %s7 = scalar_select 0, %s6, %s4
  $region1: #{ann_forward.1} parent=0
    #allocation2 [shape = 'u8[786432]{0}', space=vmem, size = 0xc0000, scoped, tag = 'input window, operand 1, single buffered']
    #allocation3 [shape = 's32[1]{0}', space=sflag, size = 0x4, scoped, tag = 'scoped memory for ann_forward.1']
    %8 = vsyncpa [#allocation3], 0
    // Predicated region
    $region2: #{ann_forward.1} parent=1 // pred_check
      _
    $region3: #{ann_forward.1} parent=1 // pred_check_branch
      %10 = sbr.rel (0) target = $region5
    $region4: #{ann_forward.1} parent=1 // pred_region
      _
    $region5: #{ann_forward.1} parent=1 // pred_fallthru
      _
    // Predicated region
    $region6: #{ann_forward.1} parent=1 // pred_check
      _
    $region7: #{ann_forward.1} parent=1 // pred_check_branch
      %12 = sbr.rel (0) target = $region9
    $region8: #{ann_forward.1} parent=1 // pred_region
      %s14 = ssub.s32 24576, 24576
      %15 = vsyncadd [#allocation3], %s14
      %s16 = sshll.u32 [#allocation2], 4
      %s17 = int_to_ptr.vmem [resolvable:$true] %s16
      %22 = dma.hbm_to_vmem [thread:$0]  %s1, 24576, %s17, [#allocation3], 128, 128, 8
    $region9: #{ann_forward.1} parent=1 // pred_fallthru
      _
    // Predicated region
    $region10: #{ann_forward.1} parent=1 // pred_check
      _
    $region11: #{ann_forward.1} parent=1 // pred_check_branch
      %24 = sbr.rel (0) target = $region13
    $region12: #{ann_forward.1} parent=1 // pred_region
      _
    $region13: #{ann_forward.1} parent=1 // pred_fallthru
      _
    // Predicated region
    $region14: #{ann_forward.1} parent=1 // pred_check
      _
    $region15: #{ann_forward.1} parent=1 // pred_check_branch
      %26 = sbr.rel (0) target = $region17
    $region16: #{ann_forward.1} parent=1 // pred_region
      %27 = dma.done [#allocation3], 24576
    $region17: #{ann_forward.1} parent=1 // pred_fallthru
      _
    %v28 = vld [vmem:[%s0] sm:$0xff]
    %v29 = vld [vmem:[%s0 + $0x8] sm:$0xff]
    %v30 = vld [vmem:[%s0 + $0x10] sm:$0xff]
    %v31 = vld [vmem:[%s0 + $0x18] sm:$0xff]
    %vm32 = vcmask 179200
    %v33 = vsel %vm32, %v29, 0.0
    %v34 = vsel %vm32, %v31, 0.0
    %v35 = vpack.c.bf16 %v30, %v28
    %v36 = vpack.c.bf16 %v34, %v33
    %v37 = vld [vmem:[#allocation2] sm:$0xff]
    %v38 = vld [vmem:[#allocation2 + $0x8] sm:$0xff]
    %v39 = vld [vmem:[#allocation2 + $0x10] sm:$0xff]
    %v40 = vld [vmem:[#allocation2 + $0x18] sm:$0xff]
    %v41 = vld [vmem:[#allocation2 + $0x20] sm:$0xff]
    %v42 = vld [vmem:[#allocation2 + $0x28] sm:$0xff]
    %v43 = vld [vmem:[#allocation2 + $0x30] sm:$0xff]
    %v44 = vld [vmem:[#allocation2 + $0x38] sm:$0xff]
    %v45 = vld [vmem:[#allocation2 + $0x40] sm:$0xff]
    %v46 = vld [vmem:[#allocation2 + $0x48] sm:$0xff]
    %v47 = vld [vmem:[#allocation2 + $0x50] sm:$0xff]
    %v48 = vld [vmem:[#allocation2 + $0x58] sm:$0xff]
    %v49 = vld [vmem:[#allocation2 + $0x60] sm:$0xff]
    %v50 = vld [vmem:[#allocation2 + $0x68] sm:$0xff]
    %v51 = vld [vmem:[#allocation2 + $0x70] sm:$0xff]
    %v52 = vld [vmem:[#allocation2 + $0x78] sm:$0xff]
    %v53 = vld [vmem:[#allocation2 + $0x80] sm:$0xff]
    %v54 = vld [vmem:[#allocation2 + $0x88] sm:$0xff]
    %v55 = vld [vmem:[#allocation2 + $0x90] sm:$0xff]
    %v56 = vld [vmem:[#allocation2 + $0x98] sm:$0xff]
    %v57 = vld [vmem:[#allocation2 + $0xa0] sm:$0xff]
    %v58 = vld [vmem:[#allocation2 + $0xa8] sm:$0xff]
    %v59 = vld [vmem:[#allocation2 + $0xb0] sm:$0xff]
    %v60 = vld [vmem:[#allocation2 + $0xb8] sm:$0xff]
    %v61 = vld [vmem:[#allocation2 + $0xc0] sm:$0xff]
    %v62 = vld [vmem:[#allocation2 + $0xc8] sm:$0xff]
    %v63 = vld [vmem:[#allocation2 + $0xd0] sm:$0xff]
    %v64 = vld [vmem:[#allocation2 + $0xd8] sm:$0xff]
    %v65 = vld [vmem:[#allocation2 + $0xe0] sm:$0xff]
    %v66 = vld [vmem:[#allocation2 + $0xe8] sm:$0xff]
    %v67 = vld [vmem:[#allocation2 + $0xf0] sm:$0xff]
    %v68 = vld [vmem:[#allocation2 + $0xf8] sm:$0xff]
    %v69 = vld [vmem:[%s2] sm:$0x3]
    %v71 = vlaneseq
    %v72 = vshrl.u32 %v71, 7
    %v73 = vsub.s32 0, %v72
    %v74 = vrot.slane %v69, %v73
    %v75 = vlaneseq
    %v76 = vshrl.u32 %v75, 7
    %v77 = vsub.s32 1, %v76
    %v78 = vrot.slane %v69, %v77
    %v113 = vunpack.c.l.b16 %v37
    %v114 = vunpack.c.h.b16 %v37
    %v115 = vunpack.c.l.b16 %v38
    %v116 = vunpack.c.h.b16 %v38
    %v117 = vunpack.c.l.b16 %v39
    %v118 = vunpack.c.h.b16 %v39
    %v119 = vunpack.c.l.b16 %v40
    %v120 = vunpack.c.h.b16 %v40
    %v121 = vunpack.c.l.b16 %v41
    %v122 = vunpack.c.h.b16 %v41
    %v123 = vunpack.c.l.b16 %v42
    %v124 = vunpack.c.h.b16 %v42
    %v125 = vunpack.c.l.b16 %v43
    %v126 = vunpack.c.h.b16 %v43
    %v127 = vunpack.c.l.b16 %v44
    %v128 = vunpack.c.h.b16 %v44
    %v129 = vunpack.c.l.b16 %v45
    %v130 = vunpack.c.h.b16 %v45
    %v131 = vunpack.c.l.b16 %v46
    %v132 = vunpack.c.h.b16 %v46
    %v133 = vunpack.c.l.b16 %v47
    %v134 = vunpack.c.h.b16 %v47
    %v135 = vunpack.c.l.b16 %v48
    %v136 = vunpack.c.h.b16 %v48
    %v137 = vunpack.c.l.b16 %v49
    %v138 = vunpack.c.h.b16 %v49
    %v139 = vunpack.c.l.b16 %v50
    %v140 = vunpack.c.h.b16 %v50
    %v141 = vunpack.c.l.b16 %v51
    %v142 = vunpack.c.h.b16 %v51
    %v143 = vunpack.c.l.b16 %v52
    %v144 = vunpack.c.h.b16 %v52
    %v145 = vunpack.c.l.b16 %v53
    %v146 = vunpack.c.h.b16 %v53
    %v147 = vunpack.c.l.b16 %v54
    %v148 = vunpack.c.h.b16 %v54
    %v149 = vunpack.c.l.b16 %v55
    %v150 = vunpack.c.h.b16 %v55
    %v151 = vunpack.c.l.b16 %v56
    %v152 = vunpack.c.h.b16 %v56
    %v153 = vunpack.c.l.b16 %v57
    %v154 = vunpack.c.h.b16 %v57
    %v155 = vunpack.c.l.b16 %v58
    %v156 = vunpack.c.h.b16 %v58
    %v157 = vunpack.c.l.b16 %v59
    %v158 = vunpack.c.h.b16 %v59
    %v159 = vunpack.c.l.b16 %v60
    %v160 = vunpack.c.h.b16 %v60
    %v161 = vunpack.c.l.b16 %v61
    %v162 = vunpack.c.h.b16 %v61
    %v163 = vunpack.c.l.b16 %v62
    %v164 = vunpack.c.h.b16 %v62
    %v165 = vunpack.c.l.b16 %v63
    %v166 = vunpack.c.h.b16 %v63
    %v167 = vunpack.c.l.b16 %v64
    %v168 = vunpack.c.h.b16 %v64
    %v169 = vunpack.c.l.b16 %v65
    %v170 = vunpack.c.h.b16 %v65
    %v171 = vunpack.c.l.b16 %v66
    %v172 = vunpack.c.h.b16 %v66
    %v173 = vunpack.c.l.b16 %v67
    %v174 = vunpack.c.h.b16 %v67
    %v175 = vunpack.c.l.b16 %v68
    %v176 = vunpack.c.h.b16 %v68
    %v177 = vpack.c.b16 %v115, %v113
    %v178 = vpack.c.b16 %v116, %v114
    %v179 = vpack.c.b16 %v119, %v117
    %v180 = vpack.c.b16 %v120, %v118
    %v181 = vpack.c.b16 %v123, %v121
    %v182 = vpack.c.b16 %v124, %v122
    %v183 = vpack.c.b16 %v127, %v125
    %v184 = vpack.c.b16 %v128, %v126
    %v185 = vpack.c.b16 %v131, %v129
    %v186 = vpack.c.b16 %v132, %v130
    %v187 = vpack.c.b16 %v135, %v133
    %v188 = vpack.c.b16 %v136, %v134
    %v189 = vpack.c.b16 %v139, %v137
    %v190 = vpack.c.b16 %v140, %v138
    %v191 = vpack.c.b16 %v143, %v141
    %v192 = vpack.c.b16 %v144, %v142
    %v193 = vpack.c.b16 %v147, %v145
    %v194 = vpack.c.b16 %v148, %v146
    %v195 = vpack.c.b16 %v151, %v149
    %v196 = vpack.c.b16 %v152, %v150
    %v197 = vpack.c.b16 %v155, %v153
    %v198 = vpack.c.b16 %v156, %v154
    %v199 = vpack.c.b16 %v159, %v157
    %v200 = vpack.c.b16 %v160, %v158
    %v201 = vpack.c.b16 %v163, %v161
    %v202 = vpack.c.b16 %v164, %v162
    %v203 = vpack.c.b16 %v167, %v165
    %v204 = vpack.c.b16 %v168, %v166
    %v205 = vpack.c.b16 %v171, %v169
    %v206 = vpack.c.b16 %v172, %v170
    %v207 = vpack.c.b16 %v175, %v173
    %v208 = vpack.c.b16 %v176, %v174
    %241 = vmatprep.subr.bf16.mxu0 %v178
    %242 = vmatpush1.bf16.msra.mxu0 %v177
    %243 = vmatprep.subr.bf16.mxu0 %v180
    %244 = vmatpush1.bf16.msra.mxu0 %v179
    %245 = vmatprep.subr.bf16.mxu0 %v182
    %246 = vmatpush1.bf16.msra.mxu0 %v181
    %247 = vmatprep.subr.bf16.mxu0 %v184
    %248 = vmatpush1.bf16.msra.mxu0 %v183
    %249 = vmatprep.subr.bf16.mxu0 %v186
    %250 = vmatpush1.bf16.msra.mxu0 %v185
    %251 = vmatprep.subr.bf16.mxu0 %v188
    %252 = vmatpush1.bf16.msra.mxu0 %v187
    %253 = vmatprep.subr.bf16.mxu0 %v190
    %254 = vmatpush1.bf16.msra.mxu0 %v189
    %255 = vmatprep.subr.bf16.mxu0 %v192
    %256 = vmatpush1.bf16.msra.mxu0 %v191
    %257 = vmatprep.subr.bf16.mxu0 %v194
    %258 = vmatpush1.bf16.msra.mxu0 %v193
    %259 = vmatprep.subr.bf16.mxu0 %v196
    %260 = vmatpush1.bf16.msra.mxu0 %v195
    %261 = vmatprep.subr.bf16.mxu0 %v198
    %262 = vmatpush1.bf16.msra.mxu0 %v197
    %263 = vmatprep.subr.bf16.mxu0 %v200
    %264 = vmatpush1.bf16.msra.mxu0 %v199
    %265 = vmatprep.subr.bf16.mxu0 %v202
    %266 = vmatpush1.bf16.msra.mxu0 %v201
    %267 = vmatprep.subr.bf16.mxu0 %v204
    %268 = vmatpush1.bf16.msra.mxu0 %v203
    %269 = vmatprep.subr.bf16.mxu0 %v206
    %270 = vmatpush1.bf16.msra.mxu0 %v205
    %271 = vmatprep.subr.bf16.mxu0 %v208
    %272 = vmatpush1.bf16.msra.mxu0 %v207
    %273 = vmatprep.mubr.bf16.mxu0 %v36
    %274 = vmatmul.mubr.bf16.gmra.mrb[0].mxu0 %v35
    %v275 = vpop.f32.mrb[0].mxu0
    %v276 = vadd.f32 %v74, %v275
    %v277 = vpop.f32.mrb[0].mxu0
    %v278 = vadd.f32 %v78, %v277
    %v279 = vpop.f32.mrb[0].mxu0
    %v280 = vadd.f32 %v74, %v279
    %v281 = vpop.f32.mrb[0].mxu0
    %v282 = vadd.f32 %v78, %v281
    %283 = vdwg.mxu0
    %v284 = vmax.f32 %v276, 0.0
    %v285 = vmax.f32 %v278, 0.0
    %v286 = vmax.f32 %v280, 0.0
    %v287 = vmax.f32 %v282, 0.0
    %v288 = vpack.c.bf16 %v286, %v284
    %v289 = vpack.c.bf16 %v287, %v285
    %s290 = scalar_lea.vmem [#allocation2], 256
    %v291 = vld [vmem:[%s290] sm:$0xff]
    %v292 = vld [vmem:[%s290 + $0x8] sm:$0xff]
    %v293 = vld [vmem:[%s290 + $0x10] sm:$0xff]
    %v294 = vld [vmem:[%s290 + $0x18] sm:$0xff]
    %v295 = vld [vmem:[%s290 + $0x20] sm:$0xff]
    %v296 = vld [vmem:[%s290 + $0x28] sm:$0xff]
    %v297 = vld [vmem:[%s290 + $0x30] sm:$0xff]
    %v298 = vld [vmem:[%s290 + $0x38] sm:$0xff]
    %v299 = vld [vmem:[%s290 + $0x40] sm:$0xff]
    %v300 = vld [vmem:[%s290 + $0x48] sm:$0xff]
    %v301 = vld [vmem:[%s290 + $0x50] sm:$0xff]
    %v302 = vld [vmem:[%s290 + $0x58] sm:$0xff]
    %v303 = vld [vmem:[%s290 + $0x60] sm:$0xff]
    %v304 = vld [vmem:[%s290 + $0x68] sm:$0xff]
    %v305 = vld [vmem:[%s290 + $0x70] sm:$0xff]
    %v306 = vld [vmem:[%s290 + $0x78] sm:$0xff]
    %v307 = vld [vmem:[%s290 + $0x80] sm:$0xff]
    %v308 = vld [vmem:[%s290 + $0x88] sm:$0xff]
    %v309 = vld [vmem:[%s290 + $0x90] sm:$0xff]
    %v310 = vld [vmem:[%s290 + $0x98] sm:$0xff]
    %v311 = vld [vmem:[%s290 + $0xa0] sm:$0xff]
    %v312 = vld [vmem:[%s290 + $0xa8] sm:$0xff]
    %v313 = vld [vmem:[%s290 + $0xb0] sm:$0xff]
    %v314 = vld [vmem:[%s290 + $0xb8] sm:$0xff]
    %v315 = vld [vmem:[%s290 + $0xc0] sm:$0xff]
    %v316 = vld [vmem:[%s290 + $0xc8] sm:$0xff]
    %v317 = vld [vmem:[%s290 + $0xd0] sm:$0xff]
    %v318 = vld [vmem:[%s290 + $0xd8] sm:$0xff]
    %v319 = vld [vmem:[%s290 + $0xe0] sm:$0xff]
    %v320 = vld [vmem:[%s290 + $0xe8] sm:$0xff]
    %v321 = vld [vmem:[%s290 + $0xf0] sm:$0xff]
    %v322 = vld [vmem:[%s290 + $0xf8] sm:$0xff]
    %s323 = scalar_lea.vmem %s2, 2
    %v324 = vld [vmem:[%s323] sm:$0x3]
    %v326 = vlaneseq
    %v327 = vshrl.u32 %v326, 7
    %v328 = vsub.s32 0, %v327
    %v329 = vrot.slane %v324, %v328
    %v330 = vlaneseq
    %v331 = vshrl.u32 %v330, 7
    %v332 = vsub.s32 1, %v331
    %v333 = vrot.slane %v324, %v332
    %v368 = vunpack.c.l.b16 %v291
    %v369 = vunpack.c.h.b16 %v291
    %v370 = vunpack.c.l.b16 %v292
    %v371 = vunpack.c.h.b16 %v292
    %v372 = vunpack.c.l.b16 %v293
    %v373 = vunpack.c.h.b16 %v293
    %v374 = vunpack.c.l.b16 %v294
    %v375 = vunpack.c.h.b16 %v294
    %v376 = vunpack.c.l.b16 %v295
    %v377 = vunpack.c.h.b16 %v295
    %v378 = vunpack.c.l.b16 %v296
    %v379 = vunpack.c.h.b16 %v296
    %v380 = vunpack.c.l.b16 %v297
    %v381 = vunpack.c.h.b16 %v297
    %v382 = vunpack.c.l.b16 %v298
    %v383 = vunpack.c.h.b16 %v298
    %v384 = vunpack.c.l.b16 %v299
    %v385 = vunpack.c.h.b16 %v299
    %v386 = vunpack.c.l.b16 %v300
    %v387 = vunpack.c.h.b16 %v300
    %v388 = vunpack.c.l.b16 %v301
    %v389 = vunpack.c.h.b16 %v301
    %v390 = vunpack.c.l.b16 %v302
    %v391 = vunpack.c.h.b16 %v302
    %v392 = vunpack.c.l.b16 %v303
    %v393 = vunpack.c.h.b16 %v303
    %v394 = vunpack.c.l.b16 %v304
    %v395 = vunpack.c.h.b16 %v304
    %v396 = vunpack.c.l.b16 %v305
    %v397 = vunpack.c.h.b16 %v305
    %v398 = vunpack.c.l.b16 %v306
    %v399 = vunpack.c.h.b16 %v306
    %v400 = vunpack.c.l.b16 %v307
    %v401 = vunpack.c.h.b16 %v307
    %v402 = vunpack.c.l.b16 %v308
    %v403 = vunpack.c.h.b16 %v308
    %v404 = vunpack.c.l.b16 %v309
    %v405 = vunpack.c.h.b16 %v309
    %v406 = vunpack.c.l.b16 %v310
    %v407 = vunpack.c.h.b16 %v310
    %v408 = vunpack.c.l.b16 %v311
    %v409 = vunpack.c.h.b16 %v311
    %v410 = vunpack.c.l.b16 %v312
    %v411 = vunpack.c.h.b16 %v312
    %v412 = vunpack.c.l.b16 %v313
    %v413 = vunpack.c.h.b16 %v313
    %v414 = vunpack.c.l.b16 %v314
    %v415 = vunpack.c.h.b16 %v314
    %v416 = vunpack.c.l.b16 %v315
    %v417 = vunpack.c.h.b16 %v315
    %v418 = vunpack.c.l.b16 %v316
    %v419 = vunpack.c.h.b16 %v316
    %v420 = vunpack.c.l.b16 %v317
    %v421 = vunpack.c.h.b16 %v317
    %v422 = vunpack.c.l.b16 %v318
    %v423 = vunpack.c.h.b16 %v318
    %v424 = vunpack.c.l.b16 %v319
    %v425 = vunpack.c.h.b16 %v319
    %v426 = vunpack.c.l.b16 %v320
    %v427 = vunpack.c.h.b16 %v320
    %v428 = vunpack.c.l.b16 %v321
    %v429 = vunpack.c.h.b16 %v321
    %v430 = vunpack.c.l.b16 %v322
    %v431 = vunpack.c.h.b16 %v322
    %v432 = vpack.c.b16 %v370, %v368
    %v433 = vpack.c.b16 %v371, %v369
    %v434 = vpack.c.b16 %v374, %v372
    %v435 = vpack.c.b16 %v375, %v373
    %v436 = vpack.c.b16 %v378, %v376
    %v437 = vpack.c.b16 %v379, %v377
    %v438 = vpack.c.b16 %v382, %v380
    %v439 = vpack.c.b16 %v383, %v381
    %v440 = vpack.c.b16 %v386, %v384
    %v441 = vpack.c.b16 %v387, %v385
    %v442 = vpack.c.b16 %v390, %v388
    %v443 = vpack.c.b16 %v391, %v389
    %v444 = vpack.c.b16 %v394, %v392
    %v445 = vpack.c.b16 %v395, %v393
    %v446 = vpack.c.b16 %v398, %v396
    %v447 = vpack.c.b16 %v399, %v397
    %v448 = vpack.c.b16 %v402, %v400
    %v449 = vpack.c.b16 %v403, %v401
    %v450 = vpack.c.b16 %v406, %v404
    %v451 = vpack.c.b16 %v407, %v405
    %v452 = vpack.c.b16 %v410, %v408
    %v453 = vpack.c.b16 %v411, %v409
    %v454 = vpack.c.b16 %v414, %v412
    %v455 = vpack.c.b16 %v415, %v413
    %v456 = vpack.c.b16 %v418, %v416
    %v457 = vpack.c.b16 %v419, %v417
    %v458 = vpack.c.b16 %v422, %v420
    %v459 = vpack.c.b16 %v423, %v421
    %v460 = vpack.c.b16 %v426, %v424
    %v461 = vpack.c.b16 %v427, %v425
    %v462 = vpack.c.b16 %v430, %v428
    %v463 = vpack.c.b16 %v431, %v429
    %496 = vmatprep.subr.bf16.mxu0 %v433
    %497 = vmatpush1.bf16.msra.mxu0 %v432
    %498 = vmatprep.subr.bf16.mxu0 %v435
    %499 = vmatpush1.bf16.msra.mxu0 %v434
    %500 = vmatprep.subr.bf16.mxu0 %v437
    %501 = vmatpush1.bf16.msra.mxu0 %v436
    %502 = vmatprep.subr.bf16.mxu0 %v439
    %503 = vmatpush1.bf16.msra.mxu0 %v438
    %504 = vmatprep.subr.bf16.mxu0 %v441
    %505 = vmatpush1.bf16.msra.mxu0 %v440
    %506 = vmatprep.subr.bf16.mxu0 %v443
    %507 = vmatpush1.bf16.msra.mxu0 %v442
    %508 = vmatprep.subr.bf16.mxu0 %v445
    %509 = vmatpush1.bf16.msra.mxu0 %v444
    %510 = vmatprep.subr.bf16.mxu0 %v447
    %511 = vmatpush1.bf16.msra.mxu0 %v446
    %512 = vmatprep.subr.bf16.mxu0 %v449
    %513 = vmatpush1.bf16.msra.mxu0 %v448
    %514 = vmatprep.subr.bf16.mxu0 %v451
    %515 = vmatpush1.bf16.msra.mxu0 %v450
    %516 = vmatprep.subr.bf16.mxu0 %v453
    %517 = vmatpush1.bf16.msra.mxu0 %v452
    %518 = vmatprep.subr.bf16.mxu0 %v455
    %519 = vmatpush1.bf16.msra.mxu0 %v454
    %520 = vmatprep.subr.bf16.mxu0 %v457
    %521 = vmatpush1.bf16.msra.mxu0 %v456
    %522 = vmatprep.subr.bf16.mxu0 %v459
    %523 = vmatpush1.bf16.msra.mxu0 %v458
    %524 = vmatprep.subr.bf16.mxu0 %v461
    %525 = vmatpush1.bf16.msra.mxu0 %v460
    %526 = vmatprep.subr.bf16.mxu0 %v463
    %527 = vmatpush1.bf16.msra.mxu0 %v462
    %528 = vmatprep.mubr.bf16.mxu0 %v289
    %529 = vmatmul.mubr.bf16.gmra.mrb[0].mxu0 %v288
    %v530 = vpop.f32.mrb[0].mxu0
    %v531 = vadd.f32 %v329, %v530
    %v532 = vpop.f32.mrb[0].mxu0
    %v533 = vadd.f32 %v333, %v532
    %v534 = vpop.f32.mrb[0].mxu0
    %v535 = vadd.f32 %v329, %v534
    %v536 = vpop.f32.mrb[0].mxu0
    %v537 = vadd.f32 %v333, %v536
    %538 = vdwg.mxu0
    %v539 = vmax.f32 %v531, 0.0
    %v540 = vmax.f32 %v533, 0.0
    %v541 = vmax.f32 %v535, 0.0
    %v542 = vmax.f32 %v537, 0.0
    %v543 = vpack.c.bf16 %v541, %v539
    %v544 = vpack.c.bf16 %v542, %v540
    %s545 = scalar_lea.vmem [#allocation2], 512
    %v546 = vld [vmem:[%s545] sm:$0xff]
    %v547 = vld [vmem:[%s545 + $0x8] sm:$0xff]
    %v548 = vld [vmem:[%s545 + $0x10] sm:$0xff]
    %v549 = vld [vmem:[%s545 + $0x18] sm:$0xff]
    %v550 = vld [vmem:[%s545 + $0x20] sm:$0xff]
    %v551 = vld [vmem:[%s545 + $0x28] sm:$0xff]
    %v552 = vld [vmem:[%s545 + $0x30] sm:$0xff]
    %v553 = vld [vmem:[%s545 + $0x38] sm:$0xff]
    %v554 = vld [vmem:[%s545 + $0x40] sm:$0xff]
    %v555 = vld [vmem:[%s545 + $0x48] sm:$0xff]
    %v556 = vld [vmem:[%s545 + $0x50] sm:$0xff]
    %v557 = vld [vmem:[%s545 + $0x58] sm:$0xff]
    %v558 = vld [vmem:[%s545 + $0x60] sm:$0xff]
    %v559 = vld [vmem:[%s545 + $0x68] sm:$0xff]
    %v560 = vld [vmem:[%s545 + $0x70] sm:$0xff]
    %v561 = vld [vmem:[%s545 + $0x78] sm:$0xff]
    %v562 = vld [vmem:[%s545 + $0x80] sm:$0xff]
    %v563 = vld [vmem:[%s545 + $0x88] sm:$0xff]
    %v564 = vld [vmem:[%s545 + $0x90] sm:$0xff]
    %v565 = vld [vmem:[%s545 + $0x98] sm:$0xff]
    %v566 = vld [vmem:[%s545 + $0xa0] sm:$0xff]
    %v567 = vld [vmem:[%s545 + $0xa8] sm:$0xff]
    %v568 = vld [vmem:[%s545 + $0xb0] sm:$0xff]
    %v569 = vld [vmem:[%s545 + $0xb8] sm:$0xff]
    %v570 = vld [vmem:[%s545 + $0xc0] sm:$0xff]
    %v571 = vld [vmem:[%s545 + $0xc8] sm:$0xff]
    %v572 = vld [vmem:[%s545 + $0xd0] sm:$0xff]
    %v573 = vld [vmem:[%s545 + $0xd8] sm:$0xff]
    %v574 = vld [vmem:[%s545 + $0xe0] sm:$0xff]
    %v575 = vld [vmem:[%s545 + $0xe8] sm:$0xff]
    %v576 = vld [vmem:[%s545 + $0xf0] sm:$0xff]
    %v577 = vld [vmem:[%s545 + $0xf8] sm:$0xff]
    %s578 = scalar_lea.vmem %s2, 4
    %v579 = vld [vmem:[%s578] sm:$0x3]
    %v581 = vlaneseq
    %v582 = vshrl.u32 %v581, 7
    %v583 = vsub.s32 0, %v582
    %v584 = vrot.slane %v579, %v583
    %v585 = vlaneseq
    %v586 = vshrl.u32 %v585, 7
    %v587 = vsub.s32 1, %v586
    %v588 = vrot.slane %v579, %v587
    %v623 = vunpack.c.l.b16 %v546
    %v624 = vunpack.c.h.b16 %v546
    %v625 = vunpack.c.l.b16 %v547
    %v626 = vunpack.c.h.b16 %v547
    %v627 = vunpack.c.l.b16 %v548
    %v628 = vunpack.c.h.b16 %v548
    %v629 = vunpack.c.l.b16 %v549
    %v630 = vunpack.c.h.b16 %v549
    %v631 = vunpack.c.l.b16 %v550
    %v632 = vunpack.c.h.b16 %v550
    %v633 = vunpack.c.l.b16 %v551
    %v634 = vunpack.c.h.b16 %v551
    %v635 = vunpack.c.l.b16 %v552
    %v636 = vunpack.c.h.b16 %v552
    %v637 = vunpack.c.l.b16 %v553
    %v638 = vunpack.c.h.b16 %v553
    %v639 = vunpack.c.l.b16 %v554
    %v640 = vunpack.c.h.b16 %v554
    %v641 = vunpack.c.l.b16 %v555
    %v642 = vunpack.c.h.b16 %v555
    %v643 = vunpack.c.l.b16 %v556
    %v644 = vunpack.c.h.b16 %v556
    %v645 = vunpack.c.l.b16 %v557
    %v646 = vunpack.c.h.b16 %v557
    %v647 = vunpack.c.l.b16 %v558
    %v648 = vunpack.c.h.b16 %v558
    %v649 = vunpack.c.l.b16 %v559
    %v650 = vunpack.c.h.b16 %v559
    %v651 = vunpack.c.l.b16 %v560
    %v652 = vunpack.c.h.b16 %v560
    %v653 = vunpack.c.l.b16 %v561
    %v654 = vunpack.c.h.b16 %v561
    %v655 = vunpack.c.l.b16 %v562
    %v656 = vunpack.c.h.b16 %v562
    %v657 = vunpack.c.l.b16 %v563
    %v658 = vunpack.c.h.b16 %v563
    %v659 = vunpack.c.l.b16 %v564
    %v660 = vunpack.c.h.b16 %v564
    %v661 = vunpack.c.l.b16 %v565
    %v662 = vunpack.c.h.b16 %v565
    %v663 = vunpack.c.l.b16 %v566
    %v664 = vunpack.c.h.b16 %v566
    %v665 = vunpack.c.l.b16 %v567
    %v666 = vunpack.c.h.b16 %v567
    %v667 = vunpack.c.l.b16 %v568
    %v668 = vunpack.c.h.b16 %v568
    %v669 = vunpack.c.l.b16 %v569
    %v670 = vunpack.c.h.b16 %v569
    %v671 = vunpack.c.l.b16 %v570
    %v672 = vunpack.c.h.b16 %v570
    %v673 = vunpack.c.l.b16 %v571
    %v674 = vunpack.c.h.b16 %v571
    %v675 = vunpack.c.l.b16 %v572
    %v676 = vunpack.c.h.b16 %v572
    %v677 = vunpack.c.l.b16 %v573
    %v678 = vunpack.c.h.b16 %v573
    %v679 = vunpack.c.l.b16 %v574
    %v680 = vunpack.c.h.b16 %v574
    %v681 = vunpack.c.l.b16 %v575
    %v682 = vunpack.c.h.b16 %v575
    %v683 = vunpack.c.l.b16 %v576
    %v684 = vunpack.c.h.b16 %v576
    %v685 = vunpack.c.l.b16 %v577
    %v686 = vunpack.c.h.b16 %v577
    %v687 = vpack.c.b16 %v625, %v623
    %v688 = vpack.c.b16 %v626, %v624
    %v689 = vpack.c.b16 %v629, %v627
    %v690 = vpack.c.b16 %v630, %v628
    %v691 = vpack.c.b16 %v633, %v631
    %v692 = vpack.c.b16 %v634, %v632
    %v693 = vpack.c.b16 %v637, %v635
    %v694 = vpack.c.b16 %v638, %v636
    %v695 = vpack.c.b16 %v641, %v639
    %v696 = vpack.c.b16 %v642, %v640
    %v697 = vpack.c.b16 %v645, %v643
    %v698 = vpack.c.b16 %v646, %v644
    %v699 = vpack.c.b16 %v649, %v647
    %v700 = vpack.c.b16 %v650, %v648
    %v701 = vpack.c.b16 %v653, %v651
    %v702 = vpack.c.b16 %v654, %v652
    %v703 = vpack.c.b16 %v657, %v655
    %v704 = vpack.c.b16 %v658, %v656
    %v705 = vpack.c.b16 %v661, %v659
    %v706 = vpack.c.b16 %v662, %v660
    %v707 = vpack.c.b16 %v665, %v663
    %v708 = vpack.c.b16 %v666, %v664
    %v709 = vpack.c.b16 %v669, %v667
    %v710 = vpack.c.b16 %v670, %v668
    %v711 = vpack.c.b16 %v673, %v671
    %v712 = vpack.c.b16 %v674, %v672
    %v713 = vpack.c.b16 %v677, %v675
    %v714 = vpack.c.b16 %v678, %v676
    %v715 = vpack.c.b16 %v681, %v679
    %v716 = vpack.c.b16 %v682, %v680
    %v717 = vpack.c.b16 %v685, %v683
    %v718 = vpack.c.b16 %v686, %v684
    %751 = vmatprep.subr.bf16.mxu0 %v688
    %752 = vmatpush1.bf16.msra.mxu0 %v687
    %753 = vmatprep.subr.bf16.mxu0 %v690
    %754 = vmatpush1.bf16.msra.mxu0 %v689
    %755 = vmatprep.subr.bf16.mxu0 %v692
    %756 = vmatpush1.bf16.msra.mxu0 %v691
    %757 = vmatprep.subr.bf16.mxu0 %v694
    %758 = vmatpush1.bf16.msra.mxu0 %v693
    %759 = vmatprep.subr.bf16.mxu0 %v696
    %760 = vmatpush1.bf16.msra.mxu0 %v695
    %761 = vmatprep.subr.bf16.mxu0 %v698
    %762 = vmatpush1.bf16.msra.mxu0 %v697
    %763 = vmatprep.subr.bf16.mxu0 %v700
    %764 = vmatpush1.bf16.msra.mxu0 %v699
    %765 = vmatprep.subr.bf16.mxu0 %v702
    %766 = vmatpush1.bf16.msra.mxu0 %v701
    %767 = vmatprep.subr.bf16.mxu0 %v704
    %768 = vmatpush1.bf16.msra.mxu0 %v703
    %769 = vmatprep.subr.bf16.mxu0 %v706
    %770 = vmatpush1.bf16.msra.mxu0 %v705
    %771 = vmatprep.subr.bf16.mxu0 %v708
    %772 = vmatpush1.bf16.msra.mxu0 %v707
    %773 = vmatprep.subr.bf16.mxu0 %v710
    %774 = vmatpush1.bf16.msra.mxu0 %v709
    %775 = vmatprep.subr.bf16.mxu0 %v712
    %776 = vmatpush1.bf16.msra.mxu0 %v711
    %777 = vmatprep.subr.bf16.mxu0 %v714
    %778 = vmatpush1.bf16.msra.mxu0 %v713
    %779 = vmatprep.subr.bf16.mxu0 %v716
    %780 = vmatpush1.bf16.msra.mxu0 %v715
    %781 = vmatprep.subr.bf16.mxu0 %v718
    %782 = vmatpush1.bf16.msra.mxu0 %v717
    %783 = vmatprep.mubr.bf16.mxu0 %v544
    %784 = vmatmul.mubr.bf16.gmra.mrb[0].mxu0 %v543
    %v785 = vpop.f32.mrb[0].mxu0
    %v786 = vadd.f32 %v584, %v785
    %v787 = vpop.f32.mrb[0].mxu0
    %v788 = vadd.f32 %v588, %v787
    %v789 = vpop.f32.mrb[0].mxu0
    %v790 = vadd.f32 %v584, %v789
    %v791 = vpop.f32.mrb[0].mxu0
    %v792 = vadd.f32 %v588, %v791
    %793 = vdwg.mxu0
    %v794 = vmax.f32 %v786, 0.0
    %v795 = vmax.f32 %v788, 0.0
    %v796 = vmax.f32 %v790, 0.0
    %v797 = vmax.f32 %v792, 0.0
    %v798 = vpack.c.bf16 %v796, %v794
    %v799 = vpack.c.bf16 %v797, %v795
    %s800 = scalar_lea.vmem [#allocation2], 768
    %v801 = vld [vmem:[%s800] sm:$0xff]
    %v802 = vld [vmem:[%s800 + $0x8] sm:$0xff]
    %v803 = vld [vmem:[%s800 + $0x10] sm:$0xff]
    %v804 = vld [vmem:[%s800 + $0x18] sm:$0xff]
    %v805 = vld [vmem:[%s800 + $0x20] sm:$0xff]
    %v806 = vld [vmem:[%s800 + $0x28] sm:$0xff]
    %v807 = vld [vmem:[%s800 + $0x30] sm:$0xff]
    %v808 = vld [vmem:[%s800 + $0x38] sm:$0xff]
    %v809 = vld [vmem:[%s800 + $0x40] sm:$0xff]
    %v810 = vld [vmem:[%s800 + $0x48] sm:$0xff]
    %v811 = vld [vmem:[%s800 + $0x50] sm:$0xff]
    %v812 = vld [vmem:[%s800 + $0x58] sm:$0xff]
    %v813 = vld [vmem:[%s800 + $0x60] sm:$0xff]
    %v814 = vld [vmem:[%s800 + $0x68] sm:$0xff]
    %v815 = vld [vmem:[%s800 + $0x70] sm:$0xff]
    %v816 = vld [vmem:[%s800 + $0x78] sm:$0xff]
    %v817 = vld [vmem:[%s800 + $0x80] sm:$0xff]
    %v818 = vld [vmem:[%s800 + $0x88] sm:$0xff]
    %v819 = vld [vmem:[%s800 + $0x90] sm:$0xff]
    %v820 = vld [vmem:[%s800 + $0x98] sm:$0xff]
    %v821 = vld [vmem:[%s800 + $0xa0] sm:$0xff]
    %v822 = vld [vmem:[%s800 + $0xa8] sm:$0xff]
    %v823 = vld [vmem:[%s800 + $0xb0] sm:$0xff]
    %v824 = vld [vmem:[%s800 + $0xb8] sm:$0xff]
    %v825 = vld [vmem:[%s800 + $0xc0] sm:$0xff]
    %v826 = vld [vmem:[%s800 + $0xc8] sm:$0xff]
    %v827 = vld [vmem:[%s800 + $0xd0] sm:$0xff]
    %v828 = vld [vmem:[%s800 + $0xd8] sm:$0xff]
    %v829 = vld [vmem:[%s800 + $0xe0] sm:$0xff]
    %v830 = vld [vmem:[%s800 + $0xe8] sm:$0xff]
    %v831 = vld [vmem:[%s800 + $0xf0] sm:$0xff]
    %v832 = vld [vmem:[%s800 + $0xf8] sm:$0xff]
    %s833 = scalar_lea.vmem %s2, 6
    %v834 = vld [vmem:[%s833] sm:$0x3]
    %v836 = vlaneseq
    %v837 = vshrl.u32 %v836, 7
    %v838 = vsub.s32 0, %v837
    %v839 = vrot.slane %v834, %v838
    %v840 = vlaneseq
    %v841 = vshrl.u32 %v840, 7
    %v842 = vsub.s32 1, %v841
    %v843 = vrot.slane %v834, %v842
    %v878 = vunpack.c.l.b16 %v801
    %v879 = vunpack.c.h.b16 %v801
    %v880 = vunpack.c.l.b16 %v802
    %v881 = vunpack.c.h.b16 %v802
    %v882 = vunpack.c.l.b16 %v803
    %v883 = vunpack.c.h.b16 %v803
    %v884 = vunpack.c.l.b16 %v804
    %v885 = vunpack.c.h.b16 %v804
    %v886 = vunpack.c.l.b16 %v805
    %v887 = vunpack.c.h.b16 %v805
    %v888 = vunpack.c.l.b16 %v806
    %v889 = vunpack.c.h.b16 %v806
    %v890 = vunpack.c.l.b16 %v807
    %v891 = vunpack.c.h.b16 %v807
    %v892 = vunpack.c.l.b16 %v808
    %v893 = vunpack.c.h.b16 %v808
    %v894 = vunpack.c.l.b16 %v809
    %v895 = vunpack.c.h.b16 %v809
    %v896 = vunpack.c.l.b16 %v810
    %v897 = vunpack.c.h.b16 %v810
    %v898 = vunpack.c.l.b16 %v811
    %v899 = vunpack.c.h.b16 %v811
    %v900 = vunpack.c.l.b16 %v812
    %v901 = vunpack.c.h.b16 %v812
    %v902 = vunpack.c.l.b16 %v813
    %v903 = vunpack.c.h.b16 %v813
    %v904 = vunpack.c.l.b16 %v814
    %v905 = vunpack.c.h.b16 %v814
    %v906 = vunpack.c.l.b16 %v815
    %v907 = vunpack.c.h.b16 %v815
    %v908 = vunpack.c.l.b16 %v816
    %v909 = vunpack.c.h.b16 %v816
    %v910 = vunpack.c.l.b16 %v817
    %v911 = vunpack.c.h.b16 %v817
    %v912 = vunpack.c.l.b16 %v818
    %v913 = vunpack.c.h.b16 %v818
    %v914 = vunpack.c.l.b16 %v819
    %v915 = vunpack.c.h.b16 %v819
    %v916 = vunpack.c.l.b16 %v820
    %v917 = vunpack.c.h.b16 %v820
    %v918 = vunpack.c.l.b16 %v821
    %v919 = vunpack.c.h.b16 %v821
    %v920 = vunpack.c.l.b16 %v822
    %v921 = vunpack.c.h.b16 %v822
    %v922 = vunpack.c.l.b16 %v823
    %v923 = vunpack.c.h.b16 %v823
    %v924 = vunpack.c.l.b16 %v824
    %v925 = vunpack.c.h.b16 %v824
    %v926 = vunpack.c.l.b16 %v825
    %v927 = vunpack.c.h.b16 %v825
    %v928 = vunpack.c.l.b16 %v826
    %v929 = vunpack.c.h.b16 %v826
    %v930 = vunpack.c.l.b16 %v827
    %v931 = vunpack.c.h.b16 %v827
    %v932 = vunpack.c.l.b16 %v828
    %v933 = vunpack.c.h.b16 %v828
    %v934 = vunpack.c.l.b16 %v829
    %v935 = vunpack.c.h.b16 %v829
    %v936 = vunpack.c.l.b16 %v830
    %v937 = vunpack.c.h.b16 %v830
    %v938 = vunpack.c.l.b16 %v831
    %v939 = vunpack.c.h.b16 %v831
    %v940 = vunpack.c.l.b16 %v832
    %v941 = vunpack.c.h.b16 %v832
    %v942 = vpack.c.b16 %v880, %v878
    %v943 = vpack.c.b16 %v881, %v879
    %v944 = vpack.c.b16 %v884, %v882
    %v945 = vpack.c.b16 %v885, %v883
    %v946 = vpack.c.b16 %v888, %v886
    %v947 = vpack.c.b16 %v889, %v887
    %v948 = vpack.c.b16 %v892, %v890
    %v949 = vpack.c.b16 %v893, %v891
    %v950 = vpack.c.b16 %v896, %v894
    %v951 = vpack.c.b16 %v897, %v895
    %v952 = vpack.c.b16 %v900, %v898
    %v953 = vpack.c.b16 %v901, %v899
    %v954 = vpack.c.b16 %v904, %v902
    %v955 = vpack.c.b16 %v905, %v903
    %v956 = vpack.c.b16 %v908, %v906
    %v957 = vpack.c.b16 %v909, %v907
    %v958 = vpack.c.b16 %v912, %v910
    %v959 = vpack.c.b16 %v913, %v911
    %v960 = vpack.c.b16 %v916, %v914
    %v961 = vpack.c.b16 %v917, %v915
    %v962 = vpack.c.b16 %v920, %v918
    %v963 = vpack.c.b16 %v921, %v919
    %v964 = vpack.c.b16 %v924, %v922
    %v965 = vpack.c.b16 %v925, %v923
    %v966 = vpack.c.b16 %v928, %v926
    %v967 = vpack.c.b16 %v929, %v927
    %v968 = vpack.c.b16 %v932, %v930
    %v969 = vpack.c.b16 %v933, %v931
    %v970 = vpack.c.b16 %v936, %v934
    %v971 = vpack.c.b16 %v937, %v935
    %v972 = vpack.c.b16 %v940, %v938
    %v973 = vpack.c.b16 %v941, %v939
    %1006 = vmatprep.subr.bf16.mxu0 %v943
    %1007 = vmatpush1.bf16.msra.mxu0 %v942
    %1008 = vmatprep.subr.bf16.mxu0 %v945
    %1009 = vmatpush1.bf16.msra.mxu0 %v944
    %1010 = vmatprep.subr.bf16.mxu0 %v947
    %1011 = vmatpush1.bf16.msra.mxu0 %v946
    %1012 = vmatprep.subr.bf16.mxu0 %v949
    %1013 = vmatpush1.bf16.msra.mxu0 %v948
    %1014 = vmatprep.subr.bf16.mxu0 %v951
    %1015 = vmatpush1.bf16.msra.mxu0 %v950
    %1016 = vmatprep.subr.bf16.mxu0 %v953
    %1017 = vmatpush1.bf16.msra.mxu0 %v952
    %1018 = vmatprep.subr.bf16.mxu0 %v955
    %1019 = vmatpush1.bf16.msra.mxu0 %v954
    %1020 = vmatprep.subr.bf16.mxu0 %v957
    %1021 = vmatpush1.bf16.msra.mxu0 %v956
    %1022 = vmatprep.subr.bf16.mxu0 %v959
    %1023 = vmatpush1.bf16.msra.mxu0 %v958
    %1024 = vmatprep.subr.bf16.mxu0 %v961
    %1025 = vmatpush1.bf16.msra.mxu0 %v960
    %1026 = vmatprep.subr.bf16.mxu0 %v963
    %1027 = vmatpush1.bf16.msra.mxu0 %v962
    %1028 = vmatprep.subr.bf16.mxu0 %v965
    %1029 = vmatpush1.bf16.msra.mxu0 %v964
    %1030 = vmatprep.subr.bf16.mxu0 %v967
    %1031 = vmatpush1.bf16.msra.mxu0 %v966
    %1032 = vmatprep.subr.bf16.mxu0 %v969
    %1033 = vmatpush1.bf16.msra.mxu0 %v968
    %1034 = vmatprep.subr.bf16.mxu0 %v971
    %1035 = vmatpush1.bf16.msra.mxu0 %v970
    %1036 = vmatprep.subr.bf16.mxu0 %v973
    %1037 = vmatpush1.bf16.msra.mxu0 %v972
    %1038 = vmatprep.mubr.bf16.mxu0 %v799
    %1039 = vmatmul.mubr.bf16.gmra.mrb[0].mxu0 %v798
    %v1040 = vpop.f32.mrb[0].mxu0
    %v1041 = vadd.f32 %v839, %v1040
    %v1042 = vpop.f32.mrb[0].mxu0
    %v1043 = vadd.f32 %v843, %v1042
    %v1044 = vpop.f32.mrb[0].mxu0
    %v1045 = vadd.f32 %v839, %v1044
    %v1046 = vpop.f32.mrb[0].mxu0
    %v1047 = vadd.f32 %v843, %v1046
    %1048 = vdwg.mxu0
    %v1049 = vmax.f32 %v1041, 0.0
    %v1050 = vmax.f32 %v1043, 0.0
    %v1051 = vmax.f32 %v1045, 0.0
    %v1052 = vmax.f32 %v1047, 0.0
    %v1053 = vpack.c.bf16 %v1051, %v1049
    %v1054 = vpack.c.bf16 %v1052, %v1050
    %s1055 = scalar_lea.vmem [#allocation2], 1024
    %v1056 = vld [vmem:[%s1055] sm:$0xff]
    %v1057 = vld [vmem:[%s1055 + $0x8] sm:$0xff]
    %v1058 = vld [vmem:[%s1055 + $0x10] sm:$0xff]
    %v1059 = vld [vmem:[%s1055 + $0x18] sm:$0xff]
    %v1060 = vld [vmem:[%s1055 + $0x20] sm:$0xff]
    %v1061 = vld [vmem:[%s1055 + $0x28] sm:$0xff]
    %v1062 = vld [vmem:[%s1055 + $0x30] sm:$0xff]
    %v1063 = vld [vmem:[%s1055 + $0x38] sm:$0xff]
    %v1064 = vld [vmem:[%s1055 + $0x40] sm:$0xff]
    %v1065 = vld [vmem:[%s1055 + $0x48] sm:$0xff]
    %v1066 = vld [vmem:[%s1055 + $0x50] sm:$0xff]
    %v1067 = vld [vmem:[%s1055 + $0x58] sm:$0xff]
    %v1068 = vld [vmem:[%s1055 + $0x60] sm:$0xff]
    %v1069 = vld [vmem:[%s1055 + $0x68] sm:$0xff]
    %v1070 = vld [vmem:[%s1055 + $0x70] sm:$0xff]
    %v1071 = vld [vmem:[%s1055 + $0x78] sm:$0xff]
    %v1072 = vld [vmem:[%s1055 + $0x80] sm:$0xff]
    %v1073 = vld [vmem:[%s1055 + $0x88] sm:$0xff]
    %v1074 = vld [vmem:[%s1055 + $0x90] sm:$0xff]
    %v1075 = vld [vmem:[%s1055 + $0x98] sm:$0xff]
    %v1076 = vld [vmem:[%s1055 + $0xa0] sm:$0xff]
    %v1077 = vld [vmem:[%s1055 + $0xa8] sm:$0xff]
    %v1078 = vld [vmem:[%s1055 + $0xb0] sm:$0xff]
    %v1079 = vld [vmem:[%s1055 + $0xb8] sm:$0xff]
    %v1080 = vld [vmem:[%s1055 + $0xc0] sm:$0xff]
    %v1081 = vld [vmem:[%s1055 + $0xc8] sm:$0xff]
    %v1082 = vld [vmem:[%s1055 + $0xd0] sm:$0xff]
    %v1083 = vld [vmem:[%s1055 + $0xd8] sm:$0xff]
    %v1084 = vld [vmem:[%s1055 + $0xe0] sm:$0xff]
    %v1085 = vld [vmem:[%s1055 + $0xe8] sm:$0xff]
    %v1086 = vld [vmem:[%s1055 + $0xf0] sm:$0xff]
    %v1087 = vld [vmem:[%s1055 + $0xf8] sm:$0xff]
    %s1088 = scalar_lea.vmem %s2, 8
    %v1089 = vld [vmem:[%s1088] sm:$0x3]
    %v1091 = vlaneseq
    %v1092 = vshrl.u32 %v1091, 7
    %v1093 = vsub.s32 0, %v1092
    %v1094 = vrot.slane %v1089, %v1093
    %v1095 = vlaneseq
    %v1096 = vshrl.u32 %v1095, 7
    %v1097 = vsub.s32 1, %v1096
    %v1098 = vrot.slane %v1089, %v1097
    %v1133 = vunpack.c.l.b16 %v1056
    %v1134 = vunpack.c.h.b16 %v1056
    %v1135 = vunpack.c.l.b16 %v1057
    %v1136 = vunpack.c.h.b16 %v1057
    %v1137 = vunpack.c.l.b16 %v1058
    %v1138 = vunpack.c.h.b16 %v1058
    %v1139 = vunpack.c.l.b16 %v1059
    %v1140 = vunpack.c.h.b16 %v1059
    %v1141 = vunpack.c.l.b16 %v1060
    %v1142 = vunpack.c.h.b16 %v1060
    %v1143 = vunpack.c.l.b16 %v1061
    %v1144 = vunpack.c.h.b16 %v1061
    %v1145 = vunpack.c.l.b16 %v1062
    %v1146 = vunpack.c.h.b16 %v1062
    %v1147 = vunpack.c.l.b16 %v1063
    %v1148 = vunpack.c.h.b16 %v1063
    %v1149 = vunpack.c.l.b16 %v1064
    %v1150 = vunpack.c.h.b16 %v1064
    %v1151 = vunpack.c.l.b16 %v1065
    %v1152 = vunpack.c.h.b16 %v1065
    %v1153 = vunpack.c.l.b16 %v1066
    %v1154 = vunpack.c.h.b16 %v1066
    %v1155 = vunpack.c.l.b16 %v1067
    %v1156 = vunpack.c.h.b16 %v1067
    %v1157 = vunpack.c.l.b16 %v1068
    %v1158 = vunpack.c.h.b16 %v1068
    %v1159 = vunpack.c.l.b16 %v1069
    %v1160 = vunpack.c.h.b16 %v1069
    %v1161 = vunpack.c.l.b16 %v1070
    %v1162 = vunpack.c.h.b16 %v1070
    %v1163 = vunpack.c.l.b16 %v1071
    %v1164 = vunpack.c.h.b16 %v1071
    %v1165 = vunpack.c.l.b16 %v1072
    %v1166 = vunpack.c.h.b16 %v1072
    %v1167 = vunpack.c.l.b16 %v1073
    %v1168 = vunpack.c.h.b16 %v1073
    %v1169 = vunpack.c.l.b16 %v1074
    %v1170 = vunpack.c.h.b16 %v1074
    %v1171 = vunpack.c.l.b16 %v1075
    %v1172 = vunpack.c.h.b16 %v1075
    %v1173 = vunpack.c.l.b16 %v1076
    %v1174 = vunpack.c.h.b16 %v1076
    %v1175 = vunpack.c.l.b16 %v1077
    %v1176 = vunpack.c.h.b16 %v1077
    %v1177 = vunpack.c.l.b16 %v1078
    %v1178 = vunpack.c.h.b16 %v1078
    %v1179 = vunpack.c.l.b16 %v1079
    %v1180 = vunpack.c.h.b16 %v1079
    %v1181 = vunpack.c.l.b16 %v1080
    %v1182 = vunpack.c.h.b16 %v1080
    %v1183 = vunpack.c.l.b16 %v1081
    %v1184 = vunpack.c.h.b16 %v1081
    %v1185 = vunpack.c.l.b16 %v1082
    %v1186 = vunpack.c.h.b16 %v1082
    %v1187 = vunpack.c.l.b16 %v1083
    %v1188 = vunpack.c.h.b16 %v1083
    %v1189 = vunpack.c.l.b16 %v1084
    %v1190 = vunpack.c.h.b16 %v1084
    %v1191 = vunpack.c.l.b16 %v1085
    %v1192 = vunpack.c.h.b16 %v1085
    %v1193 = vunpack.c.l.b16 %v1086
    %v1194 = vunpack.c.h.b16 %v1086
    %v1195 = vunpack.c.l.b16 %v1087
    %v1196 = vunpack.c.h.b16 %v1087
    %v1197 = vpack.c.b16 %v1135, %v1133
    %v1198 = vpack.c.b16 %v1136, %v1134
    %v1199 = vpack.c.b16 %v1139, %v1137
    %v1200 = vpack.c.b16 %v1140, %v1138
    %v1201 = vpack.c.b16 %v1143, %v1141
    %v1202 = vpack.c.b16 %v1144, %v1142
    %v1203 = vpack.c.b16 %v1147, %v1145
    %v1204 = vpack.c.b16 %v1148, %v1146
    %v1205 = vpack.c.b16 %v1151, %v1149
    %v1206 = vpack.c.b16 %v1152, %v1150
    %v1207 = vpack.c.b16 %v1155, %v1153
    %v1208 = vpack.c.b16 %v1156, %v1154
    %v1209 = vpack.c.b16 %v1159, %v1157
    %v1210 = vpack.c.b16 %v1160, %v1158
    %v1211 = vpack.c.b16 %v1163, %v1161
    %v1212 = vpack.c.b16 %v1164, %v1162
    %v1213 = vpack.c.b16 %v1167, %v1165
    %v1214 = vpack.c.b16 %v1168, %v1166
    %v1215 = vpack.c.b16 %v1171, %v1169
    %v1216 = vpack.c.b16 %v1172, %v1170
    %v1217 = vpack.c.b16 %v1175, %v1173
    %v1218 = vpack.c.b16 %v1176, %v1174
    %v1219 = vpack.c.b16 %v1179, %v1177
    %v1220 = vpack.c.b16 %v1180, %v1178
    %v1221 = vpack.c.b16 %v1183, %v1181
    %v1222 = vpack.c.b16 %v1184, %v1182
    %v1223 = vpack.c.b16 %v1187, %v1185
    %v1224 = vpack.c.b16 %v1188, %v1186
    %v1225 = vpack.c.b16 %v1191, %v1189
    %v1226 = vpack.c.b16 %v1192, %v1190
    %v1227 = vpack.c.b16 %v1195, %v1193
    %v1228 = vpack.c.b16 %v1196, %v1194
    %1261 = vmatprep.subr.bf16.mxu0 %v1198
    %1262 = vmatpush1.bf16.msra.mxu0 %v1197
    %1263 = vmatprep.subr.bf16.mxu0 %v1200
    %1264 = vmatpush1.bf16.msra.mxu0 %v1199
    %1265 = vmatprep.subr.bf16.mxu0 %v1202
    %1266 = vmatpush1.bf16.msra.mxu0 %v1201
    %1267 = vmatprep.subr.bf16.mxu0 %v1204
    %1268 = vmatpush1.bf16.msra.mxu0 %v1203
    %1269 = vmatprep.subr.bf16.mxu0 %v1206
    %1270 = vmatpush1.bf16.msra.mxu0 %v1205
    %1271 = vmatprep.subr.bf16.mxu0 %v1208
    %1272 = vmatpush1.bf16.msra.mxu0 %v1207
    %1273 = vmatprep.subr.bf16.mxu0 %v1210
    %1274 = vmatpush1.bf16.msra.mxu0 %v1209
    %1275 = vmatprep.subr.bf16.mxu0 %v1212
    %1276 = vmatpush1.bf16.msra.mxu0 %v1211
    %1277 = vmatprep.subr.bf16.mxu0 %v1214
    %1278 = vmatpush1.bf16.msra.mxu0 %v1213
    %1279 = vmatprep.subr.bf16.mxu0 %v1216
    %1280 = vmatpush1.bf16.msra.mxu0 %v1215
    %1281 = vmatprep.subr.bf16.mxu0 %v1218
    %1282 = vmatpush1.bf16.msra.mxu0 %v1217
    %1283 = vmatprep.subr.bf16.mxu0 %v1220
    %1284 = vmatpush1.bf16.msra.mxu0 %v1219
    %1285 = vmatprep.subr.bf16.mxu0 %v1222
    %1286 = vmatpush1.bf16.msra.mxu0 %v1221
    %1287 = vmatprep.subr.bf16.mxu0 %v1224
    %1288 = vmatpush1.bf16.msra.mxu0 %v1223
    %1289 = vmatprep.subr.bf16.mxu0 %v1226
    %1290 = vmatpush1.bf16.msra.mxu0 %v1225
    %1291 = vmatprep.subr.bf16.mxu0 %v1228
    %1292 = vmatpush1.bf16.msra.mxu0 %v1227
    %1293 = vmatprep.mubr.bf16.mxu0 %v1054
    %1294 = vmatmul.mubr.bf16.gmra.mrb[0].mxu0 %v1053
    %v1295 = vpop.f32.mrb[0].mxu0
    %v1296 = vadd.f32 %v1094, %v1295
    %v1297 = vpop.f32.mrb[0].mxu0
    %v1298 = vadd.f32 %v1098, %v1297
    %v1299 = vpop.f32.mrb[0].mxu0
    %v1300 = vadd.f32 %v1094, %v1299
    %v1301 = vpop.f32.mrb[0].mxu0
    %v1302 = vadd.f32 %v1098, %v1301
    %1303 = vdwg.mxu0
    %v1304 = vmax.f32 %v1296, 0.0
    %v1305 = vmax.f32 %v1298, 0.0
    %v1306 = vmax.f32 %v1300, 0.0
    %v1307 = vmax.f32 %v1302, 0.0
    %v1308 = vpack.c.bf16 %v1306, %v1304
    %v1309 = vpack.c.bf16 %v1307, %v1305
    %s1310 = scalar_lea.vmem [#allocation2], 1280
    %v1311 = vld [vmem:[%s1310] sm:$0xff]
    %v1312 = vld [vmem:[%s1310 + $0x8] sm:$0xff]
    %v1313 = vld [vmem:[%s1310 + $0x10] sm:$0xff]
    %v1314 = vld [vmem:[%s1310 + $0x18] sm:$0xff]
    %v1315 = vld [vmem:[%s1310 + $0x20] sm:$0xff]
    %v1316 = vld [vmem:[%s1310 + $0x28] sm:$0xff]
    %v1317 = vld [vmem:[%s1310 + $0x30] sm:$0xff]
    %v1318 = vld [vmem:[%s1310 + $0x38] sm:$0xff]
    %v1319 = vld [vmem:[%s1310 + $0x40] sm:$0xff]
    %v1320 = vld [vmem:[%s1310 + $0x48] sm:$0xff]
    %v1321 = vld [vmem:[%s1310 + $0x50] sm:$0xff]
    %v1322 = vld [vmem:[%s1310 + $0x58] sm:$0xff]
    %v1323 = vld [vmem:[%s1310 + $0x60] sm:$0xff]
    %v1324 = vld [vmem:[%s1310 + $0x68] sm:$0xff]
    %v1325 = vld [vmem:[%s1310 + $0x70] sm:$0xff]
    %v1326 = vld [vmem:[%s1310 + $0x78] sm:$0xff]
    %v1327 = vld [vmem:[%s1310 + $0x80] sm:$0xff]
    %v1328 = vld [vmem:[%s1310 + $0x88] sm:$0xff]
    %v1329 = vld [vmem:[%s1310 + $0x90] sm:$0xff]
    %v1330 = vld [vmem:[%s1310 + $0x98] sm:$0xff]
    %v1331 = vld [vmem:[%s1310 + $0xa0] sm:$0xff]
    %v1332 = vld [vmem:[%s1310 + $0xa8] sm:$0xff]
    %v1333 = vld [vmem:[%s1310 + $0xb0] sm:$0xff]
    %v1334 = vld [vmem:[%s1310 + $0xb8] sm:$0xff]
    %v1335 = vld [vmem:[%s1310 + $0xc0] sm:$0xff]
    %v1336 = vld [vmem:[%s1310 + $0xc8] sm:$0xff]
    %v1337 = vld [vmem:[%s1310 + $0xd0] sm:$0xff]
    %v1338 = vld [vmem:[%s1310 + $0xd8] sm:$0xff]
    %v1339 = vld [vmem:[%s1310 + $0xe0] sm:$0xff]
    %v1340 = vld [vmem:[%s1310 + $0xe8] sm:$0xff]
    %v1341 = vld [vmem:[%s1310 + $0xf0] sm:$0xff]
    %v1342 = vld [vmem:[%s1310 + $0xf8] sm:$0xff]
    %s1343 = scalar_lea.vmem %s2, 10
    %v1344 = vld [vmem:[%s1343] sm:$0x3]
    %v1346 = vlaneseq
    %v1347 = vshrl.u32 %v1346, 7
    %v1348 = vsub.s32 0, %v1347
    %v1349 = vrot.slane %v1344, %v1348
    %v1350 = vlaneseq
    %v1351 = vshrl.u32 %v1350, 7
    %v1352 = vsub.s32 1, %v1351
    %v1353 = vrot.slane %v1344, %v1352
    %v1388 = vunpack.c.l.b16 %v1311
    %v1389 = vunpack.c.h.b16 %v1311
    %v1390 = vunpack.c.l.b16 %v1312
    %v1391 = vunpack.c.h.b16 %v1312
    %v1392 = vunpack.c.l.b16 %v1313
    %v1393 = vunpack.c.h.b16 %v1313
    %v1394 = vunpack.c.l.b16 %v1314
    %v1395 = vunpack.c.h.b16 %v1314
    %v1396 = vunpack.c.l.b16 %v1315
    %v1397 = vunpack.c.h.b16 %v1315
    %v1398 = vunpack.c.l.b16 %v1316
    %v1399 = vunpack.c.h.b16 %v1316
    %v1400 = vunpack.c.l.b16 %v1317
    %v1401 = vunpack.c.h.b16 %v1317
    %v1402 = vunpack.c.l.b16 %v1318
    %v1403 = vunpack.c.h.b16 %v1318
    %v1404 = vunpack.c.l.b16 %v1319
    %v1405 = vunpack.c.h.b16 %v1319
    %v1406 = vunpack.c.l.b16 %v1320
    %v1407 = vunpack.c.h.b16 %v1320
    %v1408 = vunpack.c.l.b16 %v1321
    %v1409 = vunpack.c.h.b16 %v1321
    %v1410 = vunpack.c.l.b16 %v1322
    %v1411 = vunpack.c.h.b16 %v1322
    %v1412 = vunpack.c.l.b16 %v1323
    %v1413 = vunpack.c.h.b16 %v1323
    %v1414 = vunpack.c.l.b16 %v1324
    %v1415 = vunpack.c.h.b16 %v1324
    %v1416 = vunpack.c.l.b16 %v1325
    %v1417 = vunpack.c.h.b16 %v1325
    %v1418 = vunpack.c.l.b16 %v1326
    %v1419 = vunpack.c.h.b16 %v1326
    %v1420 = vunpack.c.l.b16 %v1327
    %v1421 = vunpack.c.h.b16 %v1327
    %v1422 = vunpack.c.l.b16 %v1328
    %v1423 = vunpack.c.h.b16 %v1328
    %v1424 = vunpack.c.l.b16 %v1329
    %v1425 = vunpack.c.h.b16 %v1329
    %v1426 = vunpack.c.l.b16 %v1330
    %v1427 = vunpack.c.h.b16 %v1330
    %v1428 = vunpack.c.l.b16 %v1331
    %v1429 = vunpack.c.h.b16 %v1331
    %v1430 = vunpack.c.l.b16 %v1332
    %v1431 = vunpack.c.h.b16 %v1332
    %v1432 = vunpack.c.l.b16 %v1333
    %v1433 = vunpack.c.h.b16 %v1333
    %v1434 = vunpack.c.l.b16 %v1334
    %v1435 = vunpack.c.h.b16 %v1334
    %v1436 = vunpack.c.l.b16 %v1335
    %v1437 = vunpack.c.h.b16 %v1335
    %v1438 = vunpack.c.l.b16 %v1336
    %v1439 = vunpack.c.h.b16 %v1336
    %v1440 = vunpack.c.l.b16 %v1337
    %v1441 = vunpack.c.h.b16 %v1337
    %v1442 = vunpack.c.l.b16 %v1338
    %v1443 = vunpack.c.h.b16 %v1338
    %v1444 = vunpack.c.l.b16 %v1339
    %v1445 = vunpack.c.h.b16 %v1339
    %v1446 = vunpack.c.l.b16 %v1340
    %v1447 = vunpack.c.h.b16 %v1340
    %v1448 = vunpack.c.l.b16 %v1341
    %v1449 = vunpack.c.h.b16 %v1341
    %v1450 = vunpack.c.l.b16 %v1342
    %v1451 = vunpack.c.h.b16 %v1342
    %v1452 = vpack.c.b16 %v1390, %v1388
    %v1453 = vpack.c.b16 %v1391, %v1389
    %v1454 = vpack.c.b16 %v1394, %v1392
    %v1455 = vpack.c.b16 %v1395, %v1393
    %v1456 = vpack.c.b16 %v1398, %v1396
    %v1457 = vpack.c.b16 %v1399, %v1397
    %v1458 = vpack.c.b16 %v1402, %v1400
    %v1459 = vpack.c.b16 %v1403, %v1401
    %v1460 = vpack.c.b16 %v1406, %v1404
    %v1461 = vpack.c.b16 %v1407, %v1405
    %v1462 = vpack.c.b16 %v1410, %v1408
    %v1463 = vpack.c.b16 %v1411, %v1409
    %v1464 = vpack.c.b16 %v1414, %v1412
    %v1465 = vpack.c.b16 %v1415, %v1413
    %v1466 = vpack.c.b16 %v1418, %v1416
    %v1467 = vpack.c.b16 %v1419, %v1417
    %v1468 = vpack.c.b16 %v1422, %v1420
    %v1469 = vpack.c.b16 %v1423, %v1421
    %v1470 = vpack.c.b16 %v1426, %v1424
    %v1471 = vpack.c.b16 %v1427, %v1425
    %v1472 = vpack.c.b16 %v1430, %v1428
    %v1473 = vpack.c.b16 %v1431, %v1429
    %v1474 = vpack.c.b16 %v1434, %v1432
    %v1475 = vpack.c.b16 %v1435, %v1433
    %v1476 = vpack.c.b16 %v1438, %v1436
    %v1477 = vpack.c.b16 %v1439, %v1437
    %v1478 = vpack.c.b16 %v1442, %v1440
    %v1479 = vpack.c.b16 %v1443, %v1441
    %v1480 = vpack.c.b16 %v1446, %v1444
    %v1481 = vpack.c.b16 %v1447, %v1445
    %v1482 = vpack.c.b16 %v1450, %v1448
    %v1483 = vpack.c.b16 %v1451, %v1449
    %1516 = vmatprep.subr.bf16.mxu0 %v1453
    %1517 = vmatpush1.bf16.msra.mxu0 %v1452
    %1518 = vmatprep.subr.bf16.mxu0 %v1455
    %1519 = vmatpush1.bf16.msra.mxu0 %v1454
    %1520 = vmatprep.subr.bf16.mxu0 %v1457
    %1521 = vmatpush1.bf16.msra.mxu0 %v1456
    %1522 = vmatprep.subr.bf16.mxu0 %v1459
    %1523 = vmatpush1.bf16.msra.mxu0 %v1458
    %1524 = vmatprep.subr.bf16.mxu0 %v1461
    %1525 = vmatpush1.bf16.msra.mxu0 %v1460
    %1526 = vmatprep.subr.bf16.mxu0 %v1463
    %1527 = vmatpush1.bf16.msra.mxu0 %v1462
    %1528 = vmatprep.subr.bf16.mxu0 %v1465
    %1529 = vmatpush1.bf16.msra.mxu0 %v1464
    %1530 = vmatprep.subr.bf16.mxu0 %v1467
    %1531 = vmatpush1.bf16.msra.mxu0 %v1466
    %1532 = vmatprep.subr.bf16.mxu0 %v1469
    %1533 = vmatpush1.bf16.msra.mxu0 %v1468
    %1534 = vmatprep.subr.bf16.mxu0 %v1471
    %1535 = vmatpush1.bf16.msra.mxu0 %v1470
    %1536 = vmatprep.subr.bf16.mxu0 %v1473
    %1537 = vmatpush1.bf16.msra.mxu0 %v1472
    %1538 = vmatprep.subr.bf16.mxu0 %v1475
    %1539 = vmatpush1.bf16.msra.mxu0 %v1474
    %1540 = vmatprep.subr.bf16.mxu0 %v1477
    %1541 = vmatpush1.bf16.msra.mxu0 %v1476
    %1542 = vmatprep.subr.bf16.mxu0 %v1479
    %1543 = vmatpush1.bf16.msra.mxu0 %v1478
    %1544 = vmatprep.subr.bf16.mxu0 %v1481
    %1545 = vmatpush1.bf16.msra.mxu0 %v1480
    %1546 = vmatprep.subr.bf16.mxu0 %v1483
    %1547 = vmatpush1.bf16.msra.mxu0 %v1482
    %1548 = vmatprep.mubr.bf16.mxu0 %v1309
    %1549 = vmatmul.mubr.bf16.gmra.mrb[0].mxu0 %v1308
    %v1550 = vpop.f32.mrb[0].mxu0
    %v1551 = vadd.f32 %v1349, %v1550
    %v1552 = vpop.f32.mrb[0].mxu0
    %v1553 = vadd.f32 %v1353, %v1552
    %v1554 = vpop.f32.mrb[0].mxu0
    %v1555 = vadd.f32 %v1349, %v1554
    %v1556 = vpop.f32.mrb[0].mxu0
    %v1557 = vadd.f32 %v1353, %v1556
    %1558 = vdwg.mxu0
    %1559 = vst [vmem:[%s3] sm:$0xff] %v1551
    %1560 = vst.msk [vmem:[%s3 + $0x8] sm:$0xff] %vm32, %v1553
    %1561 = vst [vmem:[%s3 + $0x10] sm:$0xff] %v1555
    %1562 = vst.msk [vmem:[%s3 + $0x18] sm:$0xff] %vm32, %v1557
    // Predicated region
    $region18: #{ann_forward.1} parent=1 // pred_check
      _
    $region19: #{ann_forward.1} parent=1 // pred_check_branch
      %1564 = sbr.rel (0) target = $region21
    $region20: #{ann_forward.1} parent=1 // pred_region
      _
    $region21: #{ann_forward.1} parent=1 // pred_fallthru
      _
    // Predicated region
    $region22: #{ann_forward.1} parent=1 // pred_check
      _
    $region23: #{ann_forward.1} parent=1 // pred_check_branch
      %1566 = sbr.rel (0) target = $region25
    $region24: #{ann_forward.1} parent=1 // pred_region
      _
    $region25: #{ann_forward.1} parent=1 // pred_fallthru
      _
    %1567 = vsyncpa [#allocation3], 1

</llo_original>
